<compile_context>
chip_gen: v5e
topology: v5e:2x2
jax: 0.10.0
libtpu: 0.0.40
codegen_flags: <defaults>
</compile_context>

<pallas_src>
import functools
from operator import itemgetter

import numpy as np

import jax
import jax.numpy as jnp
from jax.experimental import pallas as pl
from jax.experimental.pallas import tpu as pltpu


BEAM_WIDTH = 5
NSENT = 3

_OUT_LANES = 128  # lane-dense output slab width


def _round_up(x, m):
    return ((x + m - 1) // m) * m


def _vmem_budgets():
    """(pipeline_budget_bytes, vmem_limit_bytes), generation-aware.

    v5e/v6e have 128 MiB physical VMEM -> big double-buffered blocks;
    v7x has 64 MiB per TensorCore -> keep the pipeline footprint capped."""
    vmem = 64 * 1024 * 1024
    try:
        vmem = int(getattr(pltpu.get_tpu_info(), "vmem_capacity_bytes", vmem))
    except Exception:
        pass
    if vmem >= 96 * 1024 * 1024:                      # v5e / v6e
        return 32 * 1024 * 1024, 64 * 1024 * 1024
    return 16 * 1024 * 1024, 40 * 1024 * 1024         # v7x (and safe fallback)


def _choose_time_tile(T, V, requested=None):
    """Byte-targeted time tile (multiple of 8 rows).

    * sized so the double-buffered input block plus output-slab block stay
      inside the generation's pipeline budget,
    * capped so there are at least two grid steps when T allows it (shards the
      "parallel" time axis over v7x's two TensorCores, and gives the software
      pipeline something to overlap on every generation)."""
    pipeline_budget, _ = _vmem_budgets()
    row_bytes = 4 * (V + _OUT_LANES)                  # f32 input row + f32 slab row
    tt = max(8, (pipeline_budget // (2 * row_bytes)) // 8 * 8)
    if requested is not None:
        tt = min(tt, max(8, (int(requested) // 8) * 8))
    if T > 8:
        tt = min(tt, _round_up(-(-T // 2), 8))        # >= 2 grid steps
    tt = min(tt, _round_up(T, 8))
    return max(8, (tt // 8) * 8)


# ----------------------------------------------------------------------------
# Pallas kernel: per-timestep top-k over labels, emitted as one lane-dense slab.
#   lanes [0 , K)   : top-k log-prob values
#   lanes [K , 2K)  : top-k label indices (int32 bitcast into the f32 slab)
#   lanes [2K, 3K)  : raw log-probs of vocab entries 0..K-1 (reference bug)
#   lanes [3K, 128) : zero padding (keeps the writeback a single dense DMA)
# ----------------------------------------------------------------------------
def _topk_kernel(lp_ref, out_ref, *, num_k):
    K = num_k
    x = lp_ref[...].astype(jnp.float32)               # (TT, V)
    TT, V = x.shape

    # Direct stores into the VMEM output block (the vector-store slot is idle
    # in this VALU-bound kernel) instead of assembling a slab with full-width
    # selects.  Padded tail rows of the last grid block may hold garbage; all
    # reductions below are per-row and the tail writeback is clipped, so no
    # NaN/garbage guard is needed (valid emissions are log_softmax outputs).
    out_ref[...] = jnp.zeros_like(out_ref)
    out_ref[:, 2 * K:3 * K] = x[:, :K]                # raw lprobs of vocab 0..K-1

    lane = jax.lax.broadcasted_iota(jnp.int32, (1, V), 1)   # row-invariant iota
    work = x        # values; winner lanes forced to -inf
    avail = lane    # lane ids; winner lanes forced to V -> duplicate-proof
                    # tie-break even when genuine -inf values reach the top-k
    for k in range(K):                                # unrolled, K == 5
        m = jnp.max(work, axis=-1, keepdims=True)                      # (TT, 1)
        sel = jnp.min(jnp.where(work == m, avail, V), axis=-1,
                      keepdims=True)                                   # (TT, 1) i32
        out_ref[:, k:k + 1] = m
        out_ref[:, K + k:K + k + 1] = pltpu.bitcast(sel, jnp.float32)
        if k + 1 < K:
            hit = lane == sel
            work = jnp.where(hit, -jnp.inf, work)
            avail = jnp.where(hit, V, avail)
    # TODO(synk): if bundle dumps show the XLU reduce slot hot for very large
    # vocabs, pre-combine 128-lane chunks on the VALU before the final reduce.


def topk_emissions(lprobs, k=BEAM_WIDTH, time_tile=None):
    """lprobs: [T, V] -> (topk_vals [T,k] f32, topk_idx [T,k] i32, firstk [T,k] f32)."""
    T, V = lprobs.shape
    assert 3 * k <= _OUT_LANES, "beam_width too large for the output slab"
    assert k <= V
    tt = _choose_time_tile(T, V, time_tile)
    _, vmem_limit = _vmem_budgets()
    slab = pl.pallas_call(
        functools.partial(_topk_kernel, num_k=k),
        out_shape=jax.ShapeDtypeStruct((T, _OUT_LANES), jnp.float32),
        grid=(pl.cdiv(T, tt),),          # tail block padded on read, clipped on write
        in_specs=[pl.BlockSpec((tt, V), lambda t: (t, 0))],
        out_specs=pl.BlockSpec((tt, _OUT_LANES), lambda t: (t, 0)),
        compiler_params=pltpu.CompilerParams(
            dimension_semantics=("parallel",),
            vmem_limit_bytes=vmem_limit),
    )(lprobs)
    vals = slab[:, :k]
    idx = jax.lax.bitcast_convert_type(slab[:, k:2 * k], jnp.int32)
    firstk = slab[:, 2 * k:3 * k]
    return vals, idx, firstk


# ----------------------------------------------------------------------------
# Host-side beam bookkeeping (mirrors the PyTorch code verbatim).
# ----------------------------------------------------------------------------
class BeamSearchNode:
    def __init__(self, lprob, previousNode, ltrId, length):
        self.prevNode = previousNode
        self.ltrid = ltrId
        self.lprob = lprob
        self.len = length

    def eval(self, alpha=1.0):
        reward = 0
        return self.lprob / float(self.len - 1 + 1e-06) + alpha * reward


class BeamSearchDecoderPallas:
    def __init__(self, tgt_dict, blank=0):
        self.labels = self.get_labels(tgt_dict)
        self.tgt_dict = tgt_dict
        self.blank = blank
        self.SOS_token = tgt_dict['<s>']
        self.EOS_token = tgt_dict['</s>']
        self.beam_width = BEAM_WIDTH
        self.nsent = NSENT

    def get_labels(self, tgt_dict):
        labels = [0] * len(tgt_dict)
        for key, value in tgt_dict.items():
            labels[value] = key
        return labels

    def __call__(self, predicted_seq_lprobs, target_seq, seq_len):
        # predicted_seq_lprobs: [1, T, V]; target_seq: [1, T_tgt]; seq_len: [1]
        lprobs2d = predicted_seq_lprobs[0]                      # glue: squeeze batch
        _, topk_idx_dev, firstk_dev = topk_emissions(lprobs2d, self.beam_width)
        # One blocking D2H transfer of the two small (T, K) arrays — the full
        # [T, V] emission tensor never leaves the device.
        topk_idx, firstk = jax.device_get((topk_idx_dev, firstk_dev))
        topk_idx = np.asarray(topk_idx)
        firstk = np.asarray(firstk)

        # TODO(synk): the linked BeamSearchNode graph / Python sorts / EOS
        # handling / back-tracking is data-dependent scalar control flow with
        # no array-program equivalent; it stays on the host as in the reference.
        nodes = []
        EOSnodes = []
        lprob_idx = float(firstk[0, 0])         # == predicted_seq_lprobs[0, 0, 0]
        SOSnode = BeamSearchNode(lprob_idx, None, self.tgt_dict['<s>'], 1)
        nodes.append([(-SOSnode.eval(), SOSnode)])
        qsize = 1
        nextnodes = []
        for idx in range(1, int(target_seq.shape[-1])):
            if qsize > 2000:
                break
            nextnodes = []
            for n_ in nodes[-1]:
                score, n = n_
                if n.ltrid == self.EOS_token and n.prevNode is not None:
                    EOSnodes.append((-n.eval(), n))
                    continue
                for k in range(self.beam_width):
                    topk_index = int(topk_idx[idx, k])
                    lprob = float(firstk[idx, k])      # reference bug reproduced
                    node = BeamSearchNode(
                        n.lprob + lprob, n,
                        self.tgt_dict[self.labels[topk_index]], n.len + 1)
                    score = -node.eval()
                    nextnodes.append((score, node))
            nextnodes.sort(key=itemgetter(0))
            nodes.append(nextnodes[:self.nsent])

        if len(EOSnodes) == 0:
            EOSnodes = [nextnodes[i] for i in range(self.nsent)]

        decoded_toks = []
        for score, n in sorted(EOSnodes, key=lambda s: s[0]):
            id_seq = [n.ltrid]
            while n.prevNode is not None:
                n = n.prevNode
                id_seq.append(n.ltrid)
            id_seq = id_seq[::-1]
            decoded_toks.append(id_seq)
        return decoded_toks


# ----------------------------------------------------------------------------
# Demo / self-test.
# ----------------------------------------------------------------------------
if __name__ == "__main__":
    key = jax.random.PRNGKey(0)
    k0, k1, k2 = jax.random.split(key, 3)

    # --- check 1: small letter-vocab shape (demo configuration) ---
    B, T, V = 1, 8, 32
    specials = ['<s>', '<pad>', '</s>', '<unk>', '|']
    letters = [chr(ord('a') + i) for i in range(V - len(specials))]
    tgt_dict = {sym: i for i, sym in enumerate(specials + letters)}

    logits = jax.random.normal(k0, (B, T, V), dtype=jnp.float32)
    predicted_seq_lprobs = jax.nn.log_softmax(logits, axis=-1)
    target_seq = jnp.zeros((B, T), dtype=jnp.int32)   # only its length is used
    seq_len = jnp.array([T], dtype=jnp.int32)

    tv, ti, fk = topk_emissions(predicted_seq_lprobs[0], BEAM_WIDTH)
    jax.block_until_ready((tv, ti, fk))
    ref_v, ref_i = jax.lax.top_k(predicted_seq_lprobs[0], BEAM_WIDTH)
    np.testing.assert_allclose(np.asarray(tv), np.asarray(ref_v),
                               rtol=1e-6, atol=1e-6)
    np.testing.assert_array_equal(np.asarray(ti), np.asarray(ref_i))
    np.testing.assert_allclose(np.asarray(fk),
                               np.asarray(predicted_seq_lprobs[0, :, :BEAM_WIDTH]),
                               rtol=1e-6, atol=1e-6)

    # --- check 2: T not divisible by the time tile (padded/clipped tail) ---
    T2, V2 = 300, 384
    lp2 = jax.nn.log_softmax(
        jax.random.normal(k1, (T2, V2), dtype=jnp.float32), axis=-1)
    tv2, ti2, fk2 = topk_emissions(lp2, BEAM_WIDTH, time_tile=128)
    jax.block_until_ready((tv2, ti2, fk2))
    ref_v2, ref_i2 = jax.lax.top_k(lp2, BEAM_WIDTH)
    np.testing.assert_allclose(np.asarray(tv2), np.asarray(ref_v2),
                               rtol=1e-6, atol=1e-6)
    np.testing.assert_array_equal(np.asarray(ti2), np.asarray(ref_i2))
    np.testing.assert_allclose(np.asarray(fk2), np.asarray(lp2[:, :BEAM_WIDTH]),
                               rtol=1e-6, atol=1e-6)

    # --- check 3: rows containing -inf -> distinct indices, exact values ---
    T3, V3 = 16, 128
    lp3 = np.array(jax.nn.log_softmax(
        jax.random.normal(k2, (T3, V3), dtype=jnp.float32), axis=-1))
    lp3[3, :] = -np.inf
    lp3[3, 7] = -0.5
    lp3[3, 100] = -1.25
    lp3[5, :] = -np.inf
    lp3_dev = jnp.asarray(lp3)
    tv3, ti3, _ = topk_emissions(lp3_dev, BEAM_WIDTH)
    jax.block_until_ready((tv3, ti3))
    ref_v3, _ = jax.lax.top_k(lp3_dev, BEAM_WIDTH)
    np.testing.assert_allclose(np.asarray(tv3), np.asarray(ref_v3),
                               rtol=1e-6, atol=1e-6)
    tv3_np, ti3_np = np.asarray(tv3), np.asarray(ti3)
    for r in range(T3):
        assert len(set(ti3_np[r].tolist())) == BEAM_WIDTH, "duplicate top-k index"
        assert np.all((ti3_np[r] >= 0) & (ti3_np[r] < V3))
        np.testing.assert_allclose(lp3[r, ti3_np[r]], tv3_np[r],
                                   rtol=1e-6, atol=1e-6)

    # --- full decoder path (host-side beam bookkeeping mirrors PyTorch) ---
    decoder = BeamSearchDecoderPallas(tgt_dict, blank=0)
    decoded_toks = decoder(predicted_seq_lprobs, target_seq, seq_len)
    assert len(decoded_toks) >= 1 and all(len(s) >= 1 for s in decoded_toks)

    print("KERNEL_OK")
</pallas_src>

<mosaic_0001>
module attributes {stable_mosaic.version = 11 : i64} {
  func.func @_topk_kernel(%arg0: i32, %arg1: memref<8x32xf32, #tpu.memory_space<vmem>>, %arg2: memref<8x128xf32, #tpu.memory_space<vmem>>) attributes {dimension_semantics = [#tpu.dimension_semantics<parallel>], iteration_bounds = array<i64: 1>, scalar_prefetch = 0 : i64, scratch_operands = 0 : i64, tpu.core_type = #tpu.core_type<tc>, window_params = [{transform_indices = @transform_0, window_bounds = array<i64: 8, 32>}, {transform_indices = @transform_1, window_bounds = array<i64: 8, 128>}]} {
    %c0 = arith.constant 0 : index
    %c0_0 = arith.constant 0 : index
    %0 = vector.load %arg1[%c0, %c0_0] : memref<8x32xf32, #tpu.memory_space<vmem>>, vector<8x32xf32>
    %cst = arith.constant 0.000000e+00 : f32
    %1 = vector.broadcast %cst : f32 to vector<8x128xf32>
    %c0_1 = arith.constant 0 : index
    %c0_2 = arith.constant 0 : index
    %2 = vector.load %arg2[%c0_1, %c0_2] : memref<8x128xf32, #tpu.memory_space<vmem>>, vector<8x128xf32>
    tpu.vector_store %arg2[%c0_1, %c0_2], %1 {strides = array<i32>} : memref<8x128xf32, #tpu.memory_space<vmem>>, vector<8x128xf32>,
    %3 = vector.extract_strided_slice %0 {offsets = [0, 0], sizes = [8, 5], strides = [1, 1]} : vector<8x32xf32> to vector<8x5xf32>
    %c0_3 = arith.constant 0 : index
    %c10 = arith.constant 10 : index
    %4 = vector.load %arg2[%c0_3, %c10] : memref<8x128xf32, #tpu.memory_space<vmem>>, vector<8x5xf32>
    tpu.vector_store %arg2[%c0_3, %c10], %3 {strides = array<i32>} : memref<8x128xf32, #tpu.memory_space<vmem>>, vector<8x5xf32>,
    %5 = tpu.iota {dimensions = array<i32: 1>} : vector<1x32xi32>
    %cst_4 = arith.constant dense<0xFF800000> : vector<8xf32>
    %6 = vector.multi_reduction <maximumf>, %0, %cst_4 [1] : vector<8x32xf32> to vector<8xf32>
    %7 = vector.shape_cast %6 : vector<8xf32> to vector<8x1xf32>
    %8 = vector.broadcast %7 : vector<8x1xf32> to vector<8x32xf32>
    %9 = arith.cmpf oeq, %0, %8 : vector<8x32xf32>
    %c32_i32 = arith.constant 32 : i32
    %10 = vector.shape_cast %5 : vector<1x32xi32> to vector<1x32xi32>
    %11 = vector.broadcast %10 : vector<1x32xi32> to vector<8x32xi32>
    %12 = vector.broadcast %c32_i32 : i32 to vector<8x32xi32>
    %13 = arith.select %9, %11, %12 : vector<8x32xi1>, vector<8x32xi32>
    %cst_5 = arith.constant dense<2147483647> : vector<8xi32>
    %14 = vector.multi_reduction <minsi>, %13, %cst_5 [1] : vector<8x32xi32> to vector<8xi32>
    %15 = vector.shape_cast %14 : vector<8xi32> to vector<8x1xi32>
    %c0_6 = arith.constant 0 : index
    %c0_7 = arith.constant 0 : index
    %16 = vector.load %arg2[%c0_6, %c0_7] : memref<8x128xf32, #tpu.memory_space<vmem>>, vector<8x1xf32>
    tpu.vector_store %arg2[%c0_6, %c0_7], %7 {strides = array<i32>} : memref<8x128xf32, #tpu.memory_space<vmem>>, vector<8x1xf32>,
    %17 = tpu.bitcast %15 : vector<8x1xi32> -> vector<8x1xf32>
    %c0_8 = arith.constant 0 : index
    %c5 = arith.constant 5 : index
    %18 = vector.load %arg2[%c0_8, %c5] : memref<8x128xf32, #tpu.memory_space<vmem>>, vector<8x1xf32>
    tpu.vector_store %arg2[%c0_8, %c5], %17 {strides = array<i32>} : memref<8x128xf32, #tpu.memory_space<vmem>>, vector<8x1xf32>,
    %19 = vector.broadcast %5 : vector<1x32xi32> to vector<8x32xi32>
    %20 = vector.broadcast %15 : vector<8x1xi32> to vector<8x32xi32>
    %21 = arith.cmpi eq, %19, %20 : vector<8x32xi32>
    %cst_9 = arith.constant 0xFF800000 : f32
    %22 = vector.broadcast %cst_9 : f32 to vector<8x32xf32>
    %23 = arith.select %21, %22, %0 : vector<8x32xi1>, vector<8x32xf32>
    %c32_i32_10 = arith.constant 32 : i32
    %24 = vector.broadcast %c32_i32_10 : i32 to vector<8x32xi32>
    %25 = vector.shape_cast %5 : vector<1x32xi32> to vector<1x32xi32>
    %26 = vector.broadcast %25 : vector<1x32xi32> to vector<8x32xi32>
    %27 = arith.select %21, %24, %26 : vector<8x32xi1>, vector<8x32xi32>
    %cst_11 = arith.constant dense<0xFF800000> : vector<8xf32>
    %28 = vector.multi_reduction <maximumf>, %23, %cst_11 [1] : vector<8x32xf32> to vector<8xf32>
    %29 = vector.shape_cast %28 : vector<8xf32> to vector<8x1xf32>
    %30 = vector.broadcast %29 : vector<8x1xf32> to vector<8x32xf32>
    %31 = arith.cmpf oeq, %23, %30 : vector<8x32xf32>
    %c32_i32_12 = arith.constant 32 : i32
    %32 = vector.broadcast %c32_i32_12 : i32 to vector<8x32xi32>
    %33 = arith.select %31, %27, %32 : vector<8x32xi1>, vector<8x32xi32>
    %cst_13 = arith.constant dense<2147483647> : vector<8xi32>
    %34 = vector.multi_reduction <minsi>, %33, %cst_13 [1] : vector<8x32xi32> to vector<8xi32>
    %35 = vector.shape_cast %34 : vector<8xi32> to vector<8x1xi32>
    %c0_14 = arith.constant 0 : index
    %c1 = arith.constant 1 : index
    %36 = vector.load %arg2[%c0_14, %c1] : memref<8x128xf32, #tpu.memory_space<vmem>>, vector<8x1xf32>
    tpu.vector_store %arg2[%c0_14, %c1], %29 {strides = array<i32>} : memref<8x128xf32, #tpu.memory_space<vmem>>, vector<8x1xf32>,
    %37 = tpu.bitcast %35 : vector<8x1xi32> -> vector<8x1xf32>
    %c0_15 = arith.constant 0 : index
    %c6 = arith.constant 6 : index
    %38 = vector.load %arg2[%c0_15, %c6] : memref<8x128xf32, #tpu.memory_space<vmem>>, vector<8x1xf32>
    tpu.vector_store %arg2[%c0_15, %c6], %37 {strides = array<i32>} : memref<8x128xf32, #tpu.memory_space<vmem>>, vector<8x1xf32>,
    %39 = vector.broadcast %5 : vector<1x32xi32> to vector<8x32xi32>
    %40 = vector.broadcast %35 : vector<8x1xi32> to vector<8x32xi32>
    %41 = arith.cmpi eq, %39, %40 : vector<8x32xi32>
    %cst_16 = arith.constant 0xFF800000 : f32
    %42 = vector.broadcast %cst_16 : f32 to vector<8x32xf32>
    %43 = arith.select %41, %42, %23 : vector<8x32xi1>, vector<8x32xf32>
    %c32_i32_17 = arith.constant 32 : i32
    %44 = vector.broadcast %c32_i32_17 : i32 to vector<8x32xi32>
    %45 = arith.select %41, %44, %27 : vector<8x32xi1>, vector<8x32xi32>
    %cst_18 = arith.constant dense<0xFF800000> : vector<8xf32>
    %46 = vector.multi_reduction <maximumf>, %43, %cst_18 [1] : vector<8x32xf32> to vector<8xf32>
    %47 = vector.shape_cast %46 : vector<8xf32> to vector<8x1xf32>
    %48 = vector.broadcast %47 : vector<8x1xf32> to vector<8x32xf32>
    %49 = arith.cmpf oeq, %43, %48 : vector<8x32xf32>
    %c32_i32_19 = arith.constant 32 : i32
    %50 = vector.broadcast %c32_i32_19 : i32 to vector<8x32xi32>
    %51 = arith.select %49, %45, %50 : vector<8x32xi1>, vector<8x32xi32>
    %cst_20 = arith.constant dense<2147483647> : vector<8xi32>
    %52 = vector.multi_reduction <minsi>, %51, %cst_20 [1] : vector<8x32xi32> to vector<8xi32>
    %53 = vector.shape_cast %52 : vector<8xi32> to vector<8x1xi32>
    %c0_21 = arith.constant 0 : index
    %c2 = arith.constant 2 : index
    %54 = vector.load %arg2[%c0_21, %c2] : memref<8x128xf32, #tpu.memory_space<vmem>>, vector<8x1xf32>
    tpu.vector_store %arg2[%c0_21, %c2], %47 {strides = array<i32>} : memref<8x128xf32, #tpu.memory_space<vmem>>, vector<8x1xf32>,
    %55 = tpu.bitcast %53 : vector<8x1xi32> -> vector<8x1xf32>
    %c0_22 = arith.constant 0 : index
    %c7 = arith.constant 7 : index
    %56 = vector.load %arg2[%c0_22, %c7] : memref<8x128xf32, #tpu.memory_space<vmem>>, vector<8x1xf32>
    tpu.vector_store %arg2[%c0_22, %c7], %55 {strides = array<i32>} : memref<8x128xf32, #tpu.memory_space<vmem>>, vector<8x1xf32>,
    %57 = vector.broadcast %5 : vector<1x32xi32> to vector<8x32xi32>
    %58 = vector.broadcast %53 : vector<8x1xi32> to vector<8x32xi32>
    %59 = arith.cmpi eq, %57, %58 : vector<8x32xi32>
    %cst_23 = arith.constant 0xFF800000 : f32
    %60 = vector.broadcast %cst_23 : f32 to vector<8x32xf32>
    %61 = arith.select %59, %60, %43 : vector<8x32xi1>, vector<8x32xf32>
    %c32_i32_24 = arith.constant 32 : i32
    %62 = vector.broadcast %c32_i32_24 : i32 to vector<8x32xi32>
    %63 = arith.select %59, %62, %45 : vector<8x32xi1>, vector<8x32xi32>
    %cst_25 = arith.constant dense<0xFF800000> : vector<8xf32>
    %64 = vector.multi_reduction <maximumf>, %61, %cst_25 [1] : vector<8x32xf32> to vector<8xf32>
    %65 = vector.shape_cast %64 : vector<8xf32> to vector<8x1xf32>
    %66 = vector.broadcast %65 : vector<8x1xf32> to vector<8x32xf32>
    %67 = arith.cmpf oeq, %61, %66 : vector<8x32xf32>
    %c32_i32_26 = arith.constant 32 : i32
    %68 = vector.broadcast %c32_i32_26 : i32 to vector<8x32xi32>
    %69 = arith.select %67, %63, %68 : vector<8x32xi1>, vector<8x32xi32>
    %cst_27 = arith.constant dense<2147483647> : vector<8xi32>
    %70 = vector.multi_reduction <minsi>, %69, %cst_27 [1] : vector<8x32xi32> to vector<8xi32>
    %71 = vector.shape_cast %70 : vector<8xi32> to vector<8x1xi32>
    %c0_28 = arith.constant 0 : index
    %c3 = arith.constant 3 : index
    %72 = vector.load %arg2[%c0_28, %c3] : memref<8x128xf32, #tpu.memory_space<vmem>>, vector<8x1xf32>
    tpu.vector_store %arg2[%c0_28, %c3], %65 {strides = array<i32>} : memref<8x128xf32, #tpu.memory_space<vmem>>, vector<8x1xf32>,
    %73 = tpu.bitcast %71 : vector<8x1xi32> -> vector<8x1xf32>
    %c0_29 = arith.constant 0 : index
    %c8 = arith.constant 8 : index
    %74 = vector.load %arg2[%c0_29, %c8] : memref<8x128xf32, #tpu.memory_space<vmem>>, vector<8x1xf32>
    tpu.vector_store %arg2[%c0_29, %c8], %73 {strides = array<i32>} : memref<8x128xf32, #tpu.memory_space<vmem>>, vector<8x1xf32>,
    %75 = vector.broadcast %5 : vector<1x32xi32> to vector<8x32xi32>
    %76 = vector.broadcast %71 : vector<8x1xi32> to vector<8x32xi32>
    %77 = arith.cmpi eq, %75, %76 : vector<8x32xi32>
    %cst_30 = arith.constant 0xFF800000 : f32
    %78 = vector.broadcast %cst_30 : f32 to vector<8x32xf32>
    %79 = arith.select %77, %78, %61 : vector<8x32xi1>, vector<8x32xf32>
    %c32_i32_31 = arith.constant 32 : i32
    %80 = vector.broadcast %c32_i32_31 : i32 to vector<8x32xi32>
    %81 = arith.select %77, %80, %63 : vector<8x32xi1>, vector<8x32xi32>
    %cst_32 = arith.constant dense<0xFF800000> : vector<8xf32>
    %82 = vector.multi_reduction <maximumf>, %79, %cst_32 [1] : vector<8x32xf32> to vector<8xf32>
    %83 = vector.shape_cast %82 : vector<8xf32> to vector<8x1xf32>
    %84 = vector.broadcast %83 : vector<8x1xf32> to vector<8x32xf32>
    %85 = arith.cmpf oeq, %79, %84 : vector<8x32xf32>
    %c32_i32_33 = arith.constant 32 : i32
    %86 = vector.broadcast %c32_i32_33 : i32 to vector<8x32xi32>
    %87 = arith.select %85, %81, %86 : vector<8x32xi1>, vector<8x32xi32>
    %cst_34 = arith.constant dense<2147483647> : vector<8xi32>
    %88 = vector.multi_reduction <minsi>, %87, %cst_34 [1] : vector<8x32xi32> to vector<8xi32>
    %89 = vector.shape_cast %88 : vector<8xi32> to vector<8x1xi32>
    %c0_35 = arith.constant 0 : index
    %c4 = arith.constant 4 : index
    %90 = vector.load %arg2[%c0_35, %c4] : memref<8x128xf32, #tpu.memory_space<vmem>>, vector<8x1xf32>
    tpu.vector_store %arg2[%c0_35, %c4], %83 {strides = array<i32>} : memref<8x128xf32, #tpu.memory_space<vmem>>, vector<8x1xf32>,
    %91 = tpu.bitcast %89 : vector<8x1xi32> -> vector<8x1xf32>
    %c0_36 = arith.constant 0 : index
    %c9 = arith.constant 9 : index
    %92 = vector.load %arg2[%c0_36, %c9] : memref<8x128xf32, #tpu.memory_space<vmem>>, vector<8x1xf32>
    tpu.vector_store %arg2[%c0_36, %c9], %91 {strides = array<i32>} : memref<8x128xf32, #tpu.memory_space<vmem>>, vector<8x1xf32>,
    return
  }
  func.func @transform_0(%arg0: i32) -> (i32, i32) {
    %c0_i32 = arith.constant 0 : i32
    %c0_i32_0 = arith.constant 0 : i32
    return %arg0, %c0_i32 : i32, i32
  }
  func.func @transform_1(%arg0: i32) -> (i32, i32) {
    %c0_i32 = arith.constant 0 : i32
    %c0_i32_0 = arith.constant 0 : i32
    return %arg0, %c0_i32 : i32, i32
  }
}

</mosaic_0001>

<llo_original>
// kernel: tpu_custom_call.1
$region0: #{tpu_custom_call.1}
  #allocation0 [shape = 'u32[]', space=smem, size = 0x4, offset = 0x4, fixed_abs, tag = 'smem constant byte address 0x4 - core index']
  #allocation1 [shape = 'u32[72,128]{1,0:T(1,128)}', space=vmem, size = 0x9000, scoped, tag = 'internal scratch']
  %s0 = inlined_call_operand.hbm [shape: f32[8,32], index: 0, kind: input, shape index: {}]
  %s1 = inlined_call_operand.hbm [shape: f32[8,128], index: 1, kind: output, shape index: {}]
  %s2 = sld [smem:[#allocation0]]
  $region18: #{tpu_custom_call.1} parent=0
    _
  %s4 = ssub.s32 1, %s2
  %s5 = scalar_select 0, %s4, %s2
  $region1: #{tpu_custom_call.1} parent=0
    #allocation2 [shape = 'u8[4096]{0}', space=vmem, size = 0x1000, scoped, tag = 'input window, operand 0, single buffered']
    #allocation3 [shape = 's32[1]{0}', space=sflag, size = 0x4, scoped, tag = 'scoped memory for tpu_custom_call.1']
    #allocation4 [shape = 's32[1]{0}', space=sflag, size = 0x4, scoped, tag = 'scoped memory for tpu_custom_call.1']
    #allocation5 [shape = 'u8[4096]{0}', space=vmem, size = 0x1000, scoped, tag = 'output window, operand 0, single buffered']
    %6 = vsyncpa [#allocation3], 0
    %7 = vsyncpa [#allocation4], 0
    // Predicated region
    $region2: #{tpu_custom_call.1} parent=1 // pred_check
      _
    $region3: #{tpu_custom_call.1} parent=1 // pred_check_branch
      %9 = sbr.rel (0) target = $region5
    $region4: #{tpu_custom_call.1} parent=1 // pred_region
      %11 = vsyncadd [#allocation3], 0
      %s13 = sshll.u32 %s0, 4
      %s14 = int_to_ptr.hbm [resolvable:$true] %s13
      %s15 = sshll.u32 [#allocation2], 4
      %s16 = int_to_ptr.vmem [resolvable:$true] %s15
      %18 = dma.hbm_to_vmem [thread:$0]  %s14, 128, %s16, [#allocation3]
    $region5: #{tpu_custom_call.1} parent=1 // pred_fallthru
      _
    // Predicated region
    $region6: #{tpu_custom_call.1} parent=1 // pred_check
      _
    $region7: #{tpu_custom_call.1} parent=1 // pred_check_branch
      %20 = sbr.rel (0) target = $region9
    $region8: #{tpu_custom_call.1} parent=1 // pred_region
      %22 = dma.done [#allocation3], 128
    $region9: #{tpu_custom_call.1} parent=1 // pred_fallthru
      _
    %v23 = vld [vmem:[#allocation2] sm:$0xff]
    %24 = vst [vmem:[#allocation5] sm:$0xff] 0.0
    %26 = vrot.lane.b32.xlu0 %v23, 10
    %v27 = vpop.permute.xlu0 %26
    %vm29 = vcmask 121936
    %30 = vst.msk [vmem:[#allocation5] sm:$0xff] %vm29, %v27
    %v31 = vlaneseq
    %v32 = vand.u32 %v31, 127
    %vm33 = vcmask 261120
    %v34 = vsel %vm33, %v23, -inf
    %35 = vmax.xlane.f32.xlu0 %v34
    %v36 = vpop.xlane.xlu0 %35
    %vm37 = vcmp.eq.f32.partialorder %v23, %v36
    %v38 = vsel %vm37, %v32, 32
    %v39 = vsel %vm33, %v38, 2147483647
    %v40 = vand.u32 %v39, 65535
    %v41 = vshra.s32 %v39, 16
    %v42 = vcvt.s32.f32 %v40
    %v43 = vcvt.s32.f32 %v41
    %44 = vmin.xlane.f32.xlu0 %v43
    %v45 = vpop.xlane.xlu0 %44
    %vm46 = vcmp.eq.f32.partialorder %v43, %v45
    %v47 = vsel %vm46, %v42, inf
    %48 = vmin.xlane.f32.xlu0 %v47
    %v49 = vpop.xlane.xlu0 %48
    %v50 = vcvt.f32.s32 %v49
    %v51 = vcvt.f32.s32 %v45
    %v52 = vshll.u32 %v51, 16
    %v53 = vadd.s32 %v52, %v50
    %vm54 = vcmask 7168
    %55 = vst.msk [vmem:[#allocation5] sm:$0xff] %vm54, %v36
    %vm57 = vcmask 48168
    %58 = vst.msk [vmem:[#allocation5] sm:$0xff] %vm57, %v53
    %vm59 = vcmp.eq.s32.totalorder %v32, %v53
    %v60 = vsel %vm59, -inf, %v23
    %v61 = vsel %vm59, 32, %v32
    %v62 = vsel %vm33, %v60, -inf
    %63 = vmax.xlane.f32.xlu0 %v62
    %v64 = vpop.xlane.xlu0 %63
    %vm65 = vcmp.eq.f32.partialorder %v60, %v64
    %v66 = vsel %vm65, %v61, 32
    %v67 = vsel %vm33, %v66, 2147483647
    %v68 = vand.u32 %v67, 65535
    %v69 = vshra.s32 %v67, 16
    %v70 = vcvt.s32.f32 %v68
    %v71 = vcvt.s32.f32 %v69
    %72 = vmin.xlane.f32.xlu0 %v71
    %v73 = vpop.xlane.xlu0 %72
    %vm74 = vcmp.eq.f32.partialorder %v71, %v73
    %v75 = vsel %vm74, %v70, inf
    %76 = vmin.xlane.f32.xlu0 %v75
    %v77 = vpop.xlane.xlu0 %76
    %v78 = vcvt.f32.s32 %v77
    %v79 = vcvt.f32.s32 %v73
    %v80 = vshll.u32 %v79, 16
    %v81 = vadd.s32 %v80, %v78
    %vm82 = vcmask 15368
    %83 = vst.msk [vmem:[#allocation5] sm:$0xff] %vm82, %v64
    %vm85 = vcmask 56368
    %86 = vst.msk [vmem:[#allocation5] sm:$0xff] %vm85, %v81
    %vm87 = vcmp.eq.s32.totalorder %v32, %v81
    %v88 = vsel %vm87, -inf, %v60
    %v89 = vsel %vm87, 32, %v61
    %v90 = vsel %vm33, %v88, -inf
    %91 = vmax.xlane.f32.xlu0 %v90
    %v92 = vpop.xlane.xlu0 %91
    %vm93 = vcmp.eq.f32.partialorder %v88, %v92
    %v94 = vsel %vm93, %v89, 32
    %v95 = vsel %vm33, %v94, 2147483647
    %v96 = vand.u32 %v95, 65535
    %v97 = vshra.s32 %v95, 16
    %v98 = vcvt.s32.f32 %v96
    %v99 = vcvt.s32.f32 %v97
    %100 = vmin.xlane.f32.xlu0 %v99
    %v101 = vpop.xlane.xlu0 %100
    %vm102 = vcmp.eq.f32.partialorder %v99, %v101
    %v103 = vsel %vm102, %v98, inf
    %104 = vmin.xlane.f32.xlu0 %v103
    %v105 = vpop.xlane.xlu0 %104
    %v106 = vcvt.f32.s32 %v105
    %v107 = vcvt.f32.s32 %v101
    %v108 = vshll.u32 %v107, 16
    %v109 = vadd.s32 %v108, %v106
    %vm110 = vcmask 23568
    %111 = vst.msk [vmem:[#allocation5] sm:$0xff] %vm110, %v92
    %vm113 = vcmask 64568
    %114 = vst.msk [vmem:[#allocation5] sm:$0xff] %vm113, %v109
    %vm115 = vcmp.eq.s32.totalorder %v32, %v109
    %v116 = vsel %vm115, -inf, %v88
    %v117 = vsel %vm115, 32, %v89
    %v118 = vsel %vm33, %v116, -inf
    %119 = vmax.xlane.f32.xlu0 %v118
    %v120 = vpop.xlane.xlu0 %119
    %vm121 = vcmp.eq.f32.partialorder %v116, %v120
    %v122 = vsel %vm121, %v117, 32
    %v123 = vsel %vm33, %v122, 2147483647
    %v124 = vand.u32 %v123, 65535
    %v125 = vshra.s32 %v123, 16
    %v126 = vcvt.s32.f32 %v124
    %v127 = vcvt.s32.f32 %v125
    %128 = vmin.xlane.f32.xlu0 %v127
    %v129 = vpop.xlane.xlu0 %128
    %vm130 = vcmp.eq.f32.partialorder %v127, %v129
    %v131 = vsel %vm130, %v126, inf
    %132 = vmin.xlane.f32.xlu0 %v131
    %v133 = vpop.xlane.xlu0 %132
    %v134 = vcvt.f32.s32 %v133
    %v135 = vcvt.f32.s32 %v129
    %v136 = vshll.u32 %v135, 16
    %v137 = vadd.s32 %v136, %v134
    %vm138 = vcmask 31768
    %139 = vst.msk [vmem:[#allocation5] sm:$0xff] %vm138, %v120
    %vm141 = vcmask 72768
    %142 = vst.msk [vmem:[#allocation5] sm:$0xff] %vm141, %v137
    %vm143 = vcmp.eq.s32.totalorder %v32, %v137
    %v144 = vsel %vm143, -inf, %v116
    %v145 = vsel %vm143, 32, %v117
    %v146 = vsel %vm33, %v144, -inf
    %147 = vmax.xlane.f32.xlu0 %v146
    %v148 = vpop.xlane.xlu0 %147
    %vm149 = vcmp.eq.f32.partialorder %v144, %v148
    %v150 = vsel %vm149, %v145, 32
    %v151 = vsel %vm33, %v150, 2147483647
    %v152 = vand.u32 %v151, 65535
    %v153 = vshra.s32 %v151, 16
    %v154 = vcvt.s32.f32 %v152
    %v155 = vcvt.s32.f32 %v153
    %156 = vmin.xlane.f32.xlu0 %v155
    %v157 = vpop.xlane.xlu0 %156
    %vm158 = vcmp.eq.f32.partialorder %v155, %v157
    %v159 = vsel %vm158, %v154, inf
    %160 = vmin.xlane.f32.xlu0 %v159
    %v161 = vpop.xlane.xlu0 %160
    %v162 = vcvt.f32.s32 %v161
    %v163 = vcvt.f32.s32 %v157
    %v164 = vshll.u32 %v163, 16
    %v165 = vadd.s32 %v164, %v162
    %vm166 = vcmask 39968
    %167 = vst.msk [vmem:[#allocation5] sm:$0xff] %vm166, %v148
    %vm169 = vcmask 80968
    %170 = vst.msk [vmem:[#allocation5] sm:$0xff] %vm169, %v165
    // Predicated region
    $region10: #{tpu_custom_call.1} parent=1 // pred_check
      _
    $region11: #{tpu_custom_call.1} parent=1 // pred_check_branch
      %172 = sbr.rel (0) target = $region13
    $region12: #{tpu_custom_call.1} parent=1 // pred_region
      %174 = vsyncadd [#allocation4], 0
      %s176 = sshll.u32 [#allocation5], 4
      %s177 = int_to_ptr.vmem [resolvable:$true] %s176
      %s178 = sshll.u32 %s1, 4
      %s179 = int_to_ptr.hbm [resolvable:$true] %s178
      %181 = dma.vmem_to_hbm [thread:$0]  %s177, 128, %s179, [#allocation4]
    $region13: #{tpu_custom_call.1} parent=1 // pred_fallthru
      _
    // Predicated region
    $region14: #{tpu_custom_call.1} parent=1 // pred_check
      _
    $region15: #{tpu_custom_call.1} parent=1 // pred_check_branch
      %183 = sbr.rel (0) target = $region17
    $region16: #{tpu_custom_call.1} parent=1 // pred_region
      %185 = dma.done [#allocation4], 128
    $region17: #{tpu_custom_call.1} parent=1 // pred_fallthru
      _
    %186 = vsyncpa [#allocation3], 1
    %187 = vsyncpa [#allocation4], 1

</llo_original>
